<compile_context>
chip_gen: v5e
topology: v5e:2x2
jax: 0.10.0
libtpu: 0.0.40
codegen_flags: <defaults>
</compile_context>

<pallas_src>
import functools

import jax
import jax.numpy as jnp
import numpy as np
from jax.experimental import pallas as pl
from jax.experimental.pallas import tpu as pltpu


def _beamform_kernel(x_ref, o_ref):
    # x_ref: (1, C_in, TILE_L) VMEM tile;  o_ref: (1, 2, TILE_L).
    x = x_ref[0].astype(jnp.float32)                       # (C_in, TILE_L)
    ch = jax.lax.broadcasted_iota(jnp.int32, x.shape, 0)   # channel index
    even_mask = (ch & 1) == 0
    zeros = jnp.zeros_like(x)
    even = jnp.sum(jnp.where(even_mask, x, zeros), axis=0, keepdims=True)
    odd = jnp.sum(jnp.where(even_mask, zeros, x), axis=0, keepdims=True)
    o_ref[0] = jnp.concatenate([even, odd], axis=0).astype(o_ref.dtype)


def make_beamform_weights(num_channels: int = 8) -> jnp.ndarray:
    """Deterministic weights of the PyTorch module, shape (C_out=2, C_in)."""
    c_out, c_in = 2, num_channels * 2
    w = np.ones((c_out, c_in), dtype=np.float32)
    w[1::2, ::2] = 0.0   # odd out channel ignores even in channels
    w[::2, 1::2] = 0.0   # even out channel ignores odd in channels
    return jnp.asarray(w)


@functools.partial(jax.jit, static_argnames=("tile_l",))
def beamform_forward(data_nchw: jnp.ndarray, tile_l: int = 4096) -> jnp.ndarray:
    """1x1 'beamform' conv: (N, C_in, H, W) float -> (N, 2, H, W) float32."""
    n, c_in, h, w = data_nchw.shape
    assert c_in % 2 == 0, "beamform expects an even number of input channels"
    l = h * w
    x = data_nchw.reshape(n, c_in, l)  # free reshape (contiguous split of HW)

    # Lane tile: whole row if short, otherwise a multiple of 128.
    if tile_l >= l:
        tl = l
    else:
        tl = max(128, (tile_l // 128) * 128)

    grid = (n, pl.cdiv(l, tl))

    out = pl.pallas_call(
        _beamform_kernel,
        out_shape=jax.ShapeDtypeStruct((n, 2, l), jnp.float32),
        grid_spec=pltpu.PrefetchScalarGridSpec(
            num_scalar_prefetch=0,
            grid=grid,
            in_specs=[pl.BlockSpec((1, c_in, tl), lambda i, j: (i, 0, j))],
            out_specs=pl.BlockSpec((1, 2, tl), lambda i, j: (i, 0, j)),
        ),
        compiler_params=pltpu.CompilerParams(
            dimension_semantics=("parallel", "parallel"),
        ),
    )(x)
    return out.reshape(n, 2, h, w)


if __name__ == "__main__":
    key = jax.random.PRNGKey(0)
    num_channels = 8
    n, c_in, h, w = 2, num_channels * 2, 16, 16  # Conv2d(in=16, out=2)

    data = jax.random.normal(key, (n, c_in, h, w), dtype=jnp.float32)
    weight = make_beamform_weights(num_channels)
    ref = jnp.einsum("nchw,oc->nohw", data, weight)

    y = jax.block_until_ready(beamform_forward(data))
    assert y.shape == (n, 2, h, w)
    np.testing.assert_allclose(np.asarray(y), np.asarray(ref), rtol=1e-5, atol=1e-5)

    # Also exercise the multi-tile + ragged-tail path (L = 20*13 = 260, tile 128).
    data2 = jax.random.normal(jax.random.PRNGKey(1), (3, c_in, 20, 13),
                              dtype=jnp.float32)
    ref2 = jnp.einsum("nchw,oc->nohw", data2, weight)
    y2 = jax.block_until_ready(beamform_forward(data2, tile_l=128))
    np.testing.assert_allclose(np.asarray(y2), np.asarray(ref2), rtol=1e-5, atol=1e-5)

    print("KERNEL_OK")
</pallas_src>

<mosaic_0001>
module attributes {stable_mosaic.version = 11 : i64} {
  func.func @_beamform_kernel(%arg0: i32, %arg1: i32, %arg2: memref<1x16x256xf32, #tpu.memory_space<vmem>>, %arg3: memref<1x2x256xf32, #tpu.memory_space<vmem>>) attributes {dimension_semantics = [#tpu.dimension_semantics<parallel>, #tpu.dimension_semantics<parallel>], iteration_bounds = array<i64: 2, 1>, scalar_prefetch = 0 : i64, scratch_operands = 0 : i64, tpu.core_type = #tpu.core_type<tc>, window_params = [{transform_indices = @transform_0, window_bounds = array<i64: 1, 16, 256>}, {transform_indices = @transform_1, window_bounds = array<i64: 1, 2, 256>}]} {
    %c0 = arith.constant 0 : index
    %c0_0 = arith.constant 0 : index
    %c0_1 = arith.constant 0 : index
    %0 = vector.load %arg2[%c0, %c0_0, %c0_1] : memref<1x16x256xf32, #tpu.memory_space<vmem>>, vector<1x16x256xf32>
    %1 = vector.shape_cast %0 : vector<1x16x256xf32> to vector<16x256xf32>
    %2 = tpu.iota {dimensions = array<i32: 0>} : vector<16x256xi32>
    %c1_i32 = arith.constant 1 : i32
    %3 = vector.broadcast %c1_i32 : i32 to vector<16x256xi32>
    %4 = arith.andi %2, %3 : vector<16x256xi32>
    %c0_i32 = arith.constant 0 : i32
    %5 = vector.broadcast %c0_i32 : i32 to vector<16x256xi32>
    %6 = arith.cmpi eq, %4, %5 : vector<16x256xi32>
    %cst = arith.constant 0.000000e+00 : f32
    %7 = vector.broadcast %cst : f32 to vector<16x256xf32>
    %8 = arith.select %6, %1, %7 : vector<16x256xi1>, vector<16x256xf32>
    %cst_2 = arith.constant dense<0.000000e+00> : vector<256xf32>
    %9 = vector.multi_reduction <add>, %8, %cst_2 [0] : vector<16x256xf32> to vector<256xf32>
    %10 = vector.shape_cast %9 : vector<256xf32> to vector<1x256xf32>
    %11 = arith.select %6, %7, %1 : vector<16x256xi1>, vector<16x256xf32>
    %cst_3 = arith.constant dense<0.000000e+00> : vector<256xf32>
    %12 = vector.multi_reduction <add>, %11, %cst_3 [0] : vector<16x256xf32> to vector<256xf32>
    %13 = vector.shape_cast %12 : vector<256xf32> to vector<1x256xf32>
    %14 = tpu.concatenate %10, %13 in 0 : vector<1x256xf32>, vector<1x256xf32> -> vector<2x256xf32>
    %c0_4 = arith.constant 0 : index
    %c0_5 = arith.constant 0 : index
    %c0_6 = arith.constant 0 : index
    %15 = vector.load %arg3[%c0_4, %c0_5, %c0_6] : memref<1x2x256xf32, #tpu.memory_space<vmem>>, vector<1x2x256xf32>
    %16 = vector.shape_cast %15 : vector<1x2x256xf32> to vector<2x256xf32>
    %17 = vector.shape_cast %14 : vector<2x256xf32> to vector<1x2x256xf32>
    tpu.vector_store %arg3[%c0_4, %c0_5, %c0_6], %17 {strides = array<i32>} : memref<1x2x256xf32, #tpu.memory_space<vmem>>, vector<1x2x256xf32>,
    return
  }
  func.func @transform_0(%arg0: i32, %arg1: i32) -> (i32, i32, i32) {
    %c0_i32 = arith.constant 0 : i32
    %c0_i32_0 = arith.constant 0 : i32
    return %arg0, %c0_i32, %arg1 : i32, i32, i32
  }
  func.func @transform_1(%arg0: i32, %arg1: i32) -> (i32, i32, i32) {
    %c0_i32 = arith.constant 0 : i32
    %c0_i32_0 = arith.constant 0 : i32
    return %arg0, %c0_i32, %arg1 : i32, i32, i32
  }
}

</mosaic_0001>

<llo_original>
// kernel: beamform_forward.1
$region0: #{beamform_forward.1}
  #allocation0 [shape = 'u32[]', space=smem, size = 0x4, offset = 0x4, fixed_abs, tag = 'smem constant byte address 0x4 - core index']
  #allocation1 [shape = 'u32[72,128]{1,0:T(1,128)}', space=vmem, size = 0x9000, scoped, tag = 'internal scratch']
  %s0 = inlined_call_operand.vmem [shape: f32[2,16,256], index: 0, kind: input, shape index: {}]
  %s1 = inlined_call_operand.vmem [shape: f32[2,2,256], index: 1, kind: output, shape index: {}]
  %s2 = sld [smem:[#allocation0]]
  $region37: #{beamform_forward.1} parent=0
    _
  %s4 = ssub.s32 1, %s2
  %s5 = scalar_select 0, %s4, %s2
  loop: start=0, step=1, limit=4
  $region2: #{beamform_forward.1} parent=0 // loop_pre_header
    _
  $region3: #{beamform_forward.1} parent=0 // loop_header
    %s7 = sphi 0, %s11
    %p8 = scmp.ge.s32.totalorder %s7, 4
    %s14 = sphi 0, %s26
    %s15 = sphi 0, %s22
    %s16 = sphi 0, %s14
    %s17 = sphi 0, %s15
    %s18 = sphi 0, %s16
    %s19 = sphi 0, %s17
    %s31 = sphi 0, %s33
    %s34 = sphi 0, %s31
    %s35 = sphi 0, %s34
    %s51 = sphi 0, %s35
    %s59 = sphi 0, %s61
    %s62 = sphi 0, %s59
    %s63 = sphi 0, %s62
    %s79 = sphi 0, %s63
  $region4: #{beamform_forward.1} parent=0 // loop_header_branch
    %10 = sbr.rel (%p8) target = $region8
  $region5: #{beamform_forward.1} parent=0 // loop_body
    %s12 = ssub.s32 %s7, 1
    %s13 = ssub.s32 %s7, 2
    %s20 = sadd.s32 1, %s15
    %p21 = scmp.ge.s32.totalorder %s20, 1
    %s22 = scalar_select %p21, 0, %s20
    %s23 = sadd.s32 1, %s14
    %s24 = scalar_select %p21, %s23, %s14
    %p25 = scmp.ge.s32.totalorder %s24, 2
    %s26 = scalar_select %p25, 0, %s24
    %s27 = ssub.s32 %s14, %s26
    %s28 = ssub.s32 %s15, %s22
    %s29 = sor.u32 %s27, %s28
    %p30 = scmp.eq.s32.totalorder %s29, 0
    %s32 = sadd.s32 %s31, 1
    %s33 = scalar_select %p30, %s31, %s32
    %p36 = pneg %p30
    %p37 = scmp.eq.s32.totalorder %s7, 1
    %p38 = por %p36, %p37
    %p39 = scmp.ne.s32.totalorder %s31, %s34
    %p40 = scmp.eq.s32.totalorder %s7, 0
    %p41 = por %p39, %p40
    %p42 = scmp.ne.s32.totalorder %s31, %s34
    %p43 = scmp.eq.s32.totalorder %s12, 1
    %p44 = por %p42, %p43
    %p45 = scmp.ne.s32.totalorder %s34, %s35
    %p46 = scmp.eq.s32.totalorder %s12, 0
    %p47 = por %p45, %p46
    %p48 = scmp.ne.s32.totalorder %s34, %s35
    %p49 = scmp.eq.s32.totalorder %s13, 1
    %p50 = por %p48, %p49
    %p52 = scmp.ne.s32.totalorder %s35, %s51
    %p53 = scmp.eq.s32.totalorder %s13, 0
    %p54 = por %p52, %p53
    %s55 = ssub.s32 %s14, %s26
    %s56 = ssub.s32 %s15, %s22
    %s57 = sor.u32 %s55, %s56
    %p58 = scmp.eq.s32.totalorder %s57, 0
    %s60 = sadd.s32 %s59, 1
    %s61 = scalar_select %p58, %s59, %s60
    %p64 = pneg %p58
    %p65 = scmp.eq.s32.totalorder %s7, 1
    %p66 = por %p64, %p65
    %p67 = scmp.ne.s32.totalorder %s59, %s62
    %p68 = scmp.eq.s32.totalorder %s7, 0
    %p69 = por %p67, %p68
    %p70 = scmp.ne.s32.totalorder %s59, %s62
    %p71 = scmp.eq.s32.totalorder %s12, 1
    %p72 = por %p70, %p71
    %p73 = scmp.ne.s32.totalorder %s62, %s63
    %p74 = scmp.eq.s32.totalorder %s12, 0
    %p75 = por %p73, %p74
    %p76 = scmp.ne.s32.totalorder %s62, %s63
    %p77 = scmp.eq.s32.totalorder %s13, 1
    %p78 = por %p76, %p77
    %p80 = scmp.ne.s32.totalorder %s63, %s79
    %p81 = scmp.eq.s32.totalorder %s13, 0
    %p82 = por %p80, %p81
    %p83 = scmp.le.s32.totalorder 1, %s7
    %p84 = scmp.lt.s32.totalorder %s7, 3
    %p85 = pnand %p83, %p84
    %p86 = pneg %p85
    // Predicated region
    $region9: #{beamform_forward.1} parent=5 // pred_check
      _
    $region10: #{beamform_forward.1} parent=5 // pred_check_branch
      %88 = sbr.rel (%p85) target = $region12
    $region11: #{beamform_forward.1} parent=5 // pred_region
      %s89 = ssub.s32 %s7, 1
    $region12: #{beamform_forward.1} parent=5 // pred_fallthru
      _
    %p90 = scmp.lt.s32.totalorder %s7, 2
    // Predicated region
    $region13: #{beamform_forward.1} parent=5 // pred_check
      %p91 = pneg %p90
    $region14: #{beamform_forward.1} parent=5 // pred_check_branch
      %93 = sbr.rel (%p91) target = $region16
    $region15: #{beamform_forward.1} parent=5 // pred_region
      // Predicated region
      $region17: #{beamform_forward.1} parent=15 // pred_check
        %p94 = pneg %p41
      $region18: #{beamform_forward.1} parent=15 // pred_check_branch
        %96 = sbr.rel (%p94) target = $region20
      $region19: #{beamform_forward.1} parent=15 // pred_region
        %s97 = smul.u32 2, %s15
        %p98 = scmp.lt.s32.totalorder %s14, 1
        %s99 = scalar_select %p98, %s14, 1
        %p100 = scmp.lt.s32.totalorder %s97, 1
        %s101 = scalar_select %p100, %s97, 1
        %s102 = smul.addr %s99, 4
        %s103 = sadd.s32 %s101, %s102
        %s104 = smul.addr %s103, 8
        %s105 = scalar_lea.vmem %s0, %s104
        %s106 = smul.u32 2, %s15
      $region20: #{beamform_forward.1} parent=15 // pred_fallthru
        _
    $region16: #{beamform_forward.1} parent=5 // pred_fallthru
      _
    %p107 = scmp.le.s32.totalorder 1, %s7
    %p108 = scmp.lt.s32.totalorder %s7, 3
    %p109 = pnand %p107, %p108
    %p110 = pneg %p109
    // Predicated region
    $region21: #{beamform_forward.1} parent=5 // pred_check
      _
    $region22: #{beamform_forward.1} parent=5 // pred_check_branch
      %112 = sbr.rel (%p109) target = $region24
    $region23: #{beamform_forward.1} parent=5 // pred_region
      %s113 = ssub.s32 %s7, 1
      %s114 = smul.u32 2, %s17
      %p115 = scmp.lt.s32.totalorder %s16, 1
      %s116 = scalar_select %p115, %s16, 1
      %p117 = scmp.lt.s32.totalorder %s114, 1
      %s118 = scalar_select %p117, %s114, 1
      %s119 = smul.addr %s116, 4
      %s120 = sadd.s32 %s118, %s119
      %s121 = smul.addr %s120, 8
      %s122 = scalar_lea.vmem %s0, %s121
      %p123 = pneg %p47
      %p124 = pneg %p44
      %p125 = pneg %p75
      %p126 = pneg %p72
      %s127 = smul.u32 2, %s17
      %p128 = scmp.lt.s32.totalorder %s16, 1
      %s129 = scalar_select %p128, %s16, 1
      %p130 = scmp.lt.s32.totalorder %s127, 1
      %s131 = scalar_select %p130, %s127, 1
      %s132 = smul.addr %s129, 2
      %s133 = sadd.s32 %s131, %s132
      %s134 = smul.addr %s133, 2
      %s135 = scalar_lea.vmem %s1, %s134
      %s136 = smul.u32 2, %s17
      %p137 = scmp.lt.s32.totalorder %s16, 1
      %s138 = scalar_select %p137, %s16, 1
      %p139 = scmp.lt.s32.totalorder %s136, 1
      %s140 = scalar_select %p139, %s136, 1
      %s141 = smul.addr %s138, 4
      %s142 = sadd.s32 %s140, %s141
      %s143 = smul.addr %s142, 8
      %s144 = scalar_lea.vmem %s0, %s143
      %s145 = smul.u32 2, %s17
      %s146 = smul.u32 2, %s17
      %p147 = scmp.lt.s32.totalorder %s16, 1
      %s148 = scalar_select %p147, %s16, 1
      %p149 = scmp.lt.s32.totalorder %s146, 1
      %s150 = scalar_select %p149, %s146, 1
      %s151 = smul.addr %s148, 2
      %s152 = sadd.s32 %s150, %s151
      %s153 = smul.addr %s152, 2
      %s154 = scalar_lea.vmem %s1, %s153
      %s155 = smul.u32 2, %s17
      %v156 = vld [vmem:[%s144] sm:$0xff]
      %v157 = vld [vmem:[%s144 + $0x8] sm:$0xff]
      %v158 = vld [vmem:[%s144 + $0x10] sm:$0xff]
      %v159 = vld [vmem:[%s144 + $0x18] sm:$0xff]
      %v160 = vlaneseq
      %v161 = vshrl.u32 %v160, 7
      %v162 = vadd.s32 %v161, 8
      %v163 = vand.u32 %v161, 1
      %v164 = vand.u32 %v162, 1
      %vm165 = vcmp.eq.s32.totalorder %v163, 0
      %vm166 = vcmp.eq.s32.totalorder %v164, 0
      %v167 = vsel %vm165, %v156, 0.0
      %v168 = vsel %vm165, %v157, 0.0
      %v169 = vsel %vm166, %v158, 0.0
      %v170 = vsel %vm166, %v159, 0.0
      %v171 = vadd.f32 %v167, %v169
      %v172 = vrot.slane %v171, 4
      %v173 = vadd.f32 %v171, %v172
      %v174 = vrot.slane %v173, 2
      %v175 = vadd.f32 %v173, %v174
      %v176 = vrot.slane %v175, 1
      %v177 = vadd.f32 %v175, %v176
      %v178 = vadd.f32 %v168, %v170
      %v179 = vrot.slane %v178, 4
      %v180 = vadd.f32 %v178, %v179
      %v181 = vrot.slane %v180, 2
      %v182 = vadd.f32 %v180, %v181
      %v183 = vrot.slane %v182, 1
      %v184 = vadd.f32 %v182, %v183
      %v185 = vsel %vm165, 0.0, %v156
      %v186 = vsel %vm165, 0.0, %v157
      %v187 = vsel %vm166, 0.0, %v158
      %v188 = vsel %vm166, 0.0, %v159
      %v189 = vadd.f32 %v185, %v187
      %v190 = vrot.slane %v189, 4
      %v191 = vadd.f32 %v189, %v190
      %v192 = vrot.slane %v191, 2
      %v193 = vadd.f32 %v191, %v192
      %v194 = vrot.slane %v193, 1
      %v195 = vadd.f32 %v193, %v194
      %v196 = vadd.f32 %v186, %v188
      %v197 = vrot.slane %v196, 4
      %v198 = vadd.f32 %v196, %v197
      %v199 = vrot.slane %v198, 2
      %v200 = vadd.f32 %v198, %v199
      %v201 = vrot.slane %v200, 1
      %v202 = vadd.f32 %v200, %v201
      %vm203 = vcmask 1040384
      %v204 = vsel %vm203, %v177, %v195
      %v205 = vsel %vm203, %v184, %v202
      %v208 = vrot.slane %v205, 6
      %vm209 = vcmask 1041408
      %v210 = vsel %vm209, %v204, %v208
      %212 = vst [vmem:[%s154] sm:$0xf] %v210
      %s213 = smul.u32 2, %s17
      %p214 = scmp.lt.s32.totalorder %s16, 1
      %s215 = scalar_select %p214, %s16, 1
      %p216 = scmp.lt.s32.totalorder %s213, 1
      %s217 = scalar_select %p216, %s213, 1
      %s218 = smul.addr %s215, 2
      %s219 = sadd.s32 %s217, %s218
      %s220 = smul.addr %s219, 2
      %s221 = scalar_lea.vmem %s1, %s220
      // Predicated region
      $region25: #{beamform_forward.1} parent=23 // pred_check
        %p222 = pneg %p72
      $region26: #{beamform_forward.1} parent=23 // pred_check_branch
        %224 = sbr.rel (%p222) target = $region28
      $region27: #{beamform_forward.1} parent=23 // pred_region
        %s225 = smul.u32 2, %s17
      $region28: #{beamform_forward.1} parent=23 // pred_fallthru
        _
    $region24: #{beamform_forward.1} parent=5 // pred_fallthru
      _
    %p226 = scmp.le.s32.totalorder 2, %s7
    // Predicated region
    $region29: #{beamform_forward.1} parent=5 // pred_check
      %p227 = pneg %p226
    $region30: #{beamform_forward.1} parent=5 // pred_check_branch
      %229 = sbr.rel (%p227) target = $region32
    $region31: #{beamform_forward.1} parent=5 // pred_region
      %s230 = ssub.s32 %s7, 2
      // Predicated region
      $region33: #{beamform_forward.1} parent=31 // pred_check
        %p231 = pneg %p78
      $region34: #{beamform_forward.1} parent=31 // pred_check_branch
        %233 = sbr.rel (%p231) target = $region36
      $region35: #{beamform_forward.1} parent=31 // pred_region
        %s234 = smul.u32 2, %s19
        %p235 = scmp.lt.s32.totalorder %s18, 1
        %s236 = scalar_select %p235, %s18, 1
        %p237 = scmp.lt.s32.totalorder %s234, 1
        %s238 = scalar_select %p237, %s234, 1
        %s239 = smul.addr %s236, 2
        %s240 = sadd.s32 %s238, %s239
        %s241 = smul.addr %s240, 2
        %s242 = scalar_lea.vmem %s1, %s241
      $region36: #{beamform_forward.1} parent=31 // pred_fallthru
        _
    $region32: #{beamform_forward.1} parent=5 // pred_fallthru
      _
  $region6: #{beamform_forward.1} parent=0 // loop_footer
    %s11 = sadd.s32 1, %s7
  $region7: #{beamform_forward.1} parent=0 // loop_footer_branch
    %6 = sbr.rel target = $region3
  $region8: #{beamform_forward.1} parent=0 // loop_exit
    _

</llo_original>
